<compile_context>
chip_gen: v5e
topology: v5e:2x2
jax: 0.10.0
libtpu: 0.0.40
codegen_flags: <defaults>
</compile_context>

<pallas_src>
from functools import partial

import jax
import jax.numpy as jnp
import numpy as np
from jax.experimental import pallas as pl
from jax.experimental.pallas import tpu as pltpu


def _pick_strip_rows(h):
    """Strip height: either the full H, or a multiple of 8 that divides H."""
    if h <= 64:
        return h
    for th in (64, 56, 48, 40, 32, 24, 16, 8):
        if h % th == 0:
            return th
    return h


def _pool_filter_kernel(x_ref, wexp_ref, o_ref, acc_ref, *, inv_hw):
    # x_ref:    (1, C, TH, W)   one row strip of one batch element
    # wexp_ref: (C*TH, GK)      1x1-conv weight, each channel row repeated TH times
    # o_ref:    (1, 1, GK)      sigmoid(conv1x1(avg_pool(x)))  (resident across strips)
    # acc_ref:  (1, GK) f32     running sum of  sum_{c,h,w} x[c,h,w] * W[c, :]
    s = pl.program_id(1)

    @pl.when(s == 0)
    def _():
        acc_ref[...] = jnp.zeros(acc_ref.shape, jnp.float32)

    C = x_ref.shape[1]
    TH = x_ref.shape[2]
    W = x_ref.shape[3]

    x2d = x_ref[0].astype(jnp.float32).reshape(C * TH, W)      # rows = (c, h)
    rowsum = jnp.sum(x2d, axis=1, keepdims=True)               # (C*TH, 1)
    acc_ref[...] += jnp.sum(rowsum * wexp_ref[...].astype(jnp.float32),
                            axis=0, keepdims=True)             # (1, GK)

    @pl.when(s == pl.num_programs(1) - 1)
    def _():
        logits = acc_ref[...] * inv_hw                         # mean folded in here
        o_ref[0] = 1.0 / (1.0 + jnp.exp(-logits))              # sigmoid


def _strip_conv_kernel(x_ref, f_ref, o_ref, pad_ref, *, k0, pad, dil):
    # x_ref:   (1, C, TH, W)       input strip
    # f_ref:   (1, C, TH, k0)      per-channel sigmoid taps (broadcast over rows)
    # o_ref:   (1, C, TH, W)       output strip
    # pad_ref: (C, TH, W + 2*pad)  VMEM scratch: reflect-padded strip (along W/lanes)
    C = x_ref.shape[1]
    TH = x_ref.shape[2]
    W = x_ref.shape[3]

    x = x_ref[0].astype(jnp.float32)                           # (C, TH, W)

    # Reflect-pad along W into the scratch. Only data + 2*pad columns are
    # written (no full zero-fill of the scratch).
    pad_ref[:, :, pad:pad + W] = x
    for p in range(pad):
        # left:  padded column p        <- x[..., pad - p]
        pad_ref[:, :, p:p + 1] = x[:, :, pad - p:pad - p + 1]
        # right: padded column W+pad+p  <- x[..., W - 2 - p]
        pad_ref[:, :, W + pad + p:W + pad + p + 1] = x[:, :, W - 2 - p:W - 1 - p]

    filt = f_ref[0].astype(jnp.float32)                        # (C, TH, k0)

    # Dilated 1D cross-correlation along W: taps at lane offsets 0, dil, 2*dil, ...
    acc = filt[:, :, 0:1] * pad_ref[:, :, 0:W]
    for t in range(1, k0):
        acc = acc + filt[:, :, t:t + 1] * pad_ref[:, :, t * dil:t * dil + W]

    o_ref[0] = acc.astype(o_ref.dtype)


def spatial_strip_att_dilated(x, conv_w, *, kernel=5, group=2, H=True, dilated=2):
    """NCHW in, NCHW out.  conv_w: (group*kernel, dim) == squeezed 1x1 conv weight."""
    if not H:
        # The H=False case is exactly the H=True case with the spatial dims swapped.
        y = spatial_strip_att_dilated(jnp.swapaxes(x, 2, 3), conv_w, kernel=kernel,
                                      group=group, H=True, dilated=dilated)
        return jnp.swapaxes(y, 2, 3)

    N, C, Him, Wim = x.shape
    if C % group != 0:
        raise ValueError("dim must be divisible by group")
    gk = group * kernel
    pad = dilated * (kernel - 1) // 2
    if Wim < pad + 1:
        raise ValueError("width must be > reflection pad")

    th = _pick_strip_rows(Him)
    S = Him // th
    vmem_limit = 48 * 1024 * 1024  # above v6e's 32MiB scoped default, below v7x physical

    # ---------------- kernel 1: global avg pool + 1x1 conv + sigmoid -----------
    wcg = conv_w.astype(jnp.float32).T                 # (C, gk)
    wexp = jnp.repeat(wcg, th, axis=0)                 # (C*th, gk): row (c*th+i) -> channel c

    pooled = pl.pallas_call(
        partial(_pool_filter_kernel, inv_hw=1.0 / float(Him * Wim)),
        out_shape=jax.ShapeDtypeStruct((N, 1, gk), jnp.float32),
        grid_spec=pltpu.PrefetchScalarGridSpec(
            num_scalar_prefetch=0,
            grid=(N, S),
            in_specs=[
                pl.BlockSpec((1, C, th, Wim), lambda n, s: (n, 0, s, 0)),
                pl.BlockSpec((C * th, gk), lambda n, s: (0, 0)),
            ],
            out_specs=pl.BlockSpec((1, 1, gk), lambda n, s: (n, 0, 0)),
            scratch_shapes=[pltpu.VMEM((1, gk), jnp.float32)],
        ),
        compiler_params=pltpu.CompilerParams(
            dimension_semantics=("parallel", "arbitrary"),
            vmem_limit_bytes=vmem_limit),
    )(x, wexp)                                         # (N, 1, gk)

    # --------- tiny filter expansion (N * C * kernel floats, plain XLA) --------
    # channel c uses group (c % group), matching torch's reshape + repeat.
    filt = pooled.reshape(N, group, kernel)
    filt = jnp.tile(filt, (1, C // group, 1))          # (N, C, kernel)
    filt = jnp.broadcast_to(filt[:, :, None, :], (N, C, th, kernel))

    # -------------- kernel 2: reflect-pad + dilated strip conv -----------------
    out = pl.pallas_call(
        partial(_strip_conv_kernel, k0=kernel, pad=pad, dil=dilated),
        out_shape=jax.ShapeDtypeStruct((N, C, Him, Wim), x.dtype),
        grid_spec=pltpu.PrefetchScalarGridSpec(
            num_scalar_prefetch=0,
            grid=(N, S),
            in_specs=[
                pl.BlockSpec((1, C, th, Wim), lambda n, s: (n, 0, s, 0)),
                pl.BlockSpec((1, C, th, kernel), lambda n, s: (n, 0, 0, 0)),
            ],
            out_specs=pl.BlockSpec((1, C, th, Wim), lambda n, s: (n, 0, s, 0)),
            scratch_shapes=[pltpu.VMEM((C, th, Wim + 2 * pad), jnp.float32)],
        ),
        compiler_params=pltpu.CompilerParams(
            dimension_semantics=("parallel", "parallel"),
            vmem_limit_bytes=vmem_limit),
    )(x, filt)
    return out


def _reference(x, conv_w, *, kernel=5, group=2, H=True, dilated=2):
    """Pure-JAX reference of the PyTorch forward (for the sanity check)."""
    N, C, Him, Wim = x.shape
    pad = dilated * (kernel - 1) // 2
    m = jnp.mean(x, axis=(2, 3))                                   # (N, C)
    logits = jnp.einsum("nc,oc->no", m, conv_w)                    # (N, group*kernel)
    f = jax.nn.sigmoid(logits).reshape(N, group, kernel)
    f = jnp.tile(f, (1, C // group, 1))                            # (N, C, kernel)
    out = jnp.zeros_like(x)
    if H:
        xp = jnp.pad(x, ((0, 0), (0, 0), (0, 0), (pad, pad)), mode="reflect")
        for t in range(kernel):
            out = out + f[:, :, t][:, :, None, None] * \
                xp[:, :, :, t * dilated:t * dilated + Wim]
    else:
        xp = jnp.pad(x, ((0, 0), (0, 0), (pad, pad), (0, 0)), mode="reflect")
        for t in range(kernel):
            out = out + f[:, :, t][:, :, None, None] * \
                xp[:, :, t * dilated:t * dilated + Him, :]
    return out


if __name__ == "__main__":
    key = jax.random.PRNGKey(0)
    kx, kw = jax.random.split(key)

    N, dim, Himg, Wimg = 2, 4, 16, 16
    kern, group, dilated = 5, 2, 2

    x = jax.random.normal(kx, (N, dim, Himg, Wimg), jnp.float32)
    conv_w = 0.3 * jax.random.normal(kw, (group * kern, dim), jnp.float32)

    out = spatial_strip_att_dilated(x, conv_w, kernel=kern, group=group,
                                    H=True, dilated=dilated)
    out = jax.block_until_ready(out)

    ref = jax.block_until_ready(_reference(x, conv_w, kernel=kern, group=group,
                                           H=True, dilated=dilated))
    np.testing.assert_allclose(np.asarray(out), np.asarray(ref),
                               rtol=1e-3, atol=1e-3)

    print("KERNEL_OK")
</pallas_src>

<mosaic_0001>
module attributes {stable_mosaic.version = 11 : i64} {
  func.func @_pool_filter_kernel(%arg0: i32, %arg1: i32, %arg2: memref<1x4x16x16xf32, #tpu.memory_space<vmem>>, %arg3: memref<64x10xf32, #tpu.memory_space<vmem>>, %arg4: memref<1x1x10xf32, #tpu.memory_space<vmem>>, %arg5: memref<1x10xf32, #tpu.memory_space<vmem>>) attributes {dimension_semantics = [#tpu.dimension_semantics<parallel>, #tpu.dimension_semantics<arbitrary>], iteration_bounds = array<i64: 2, 1>, scalar_prefetch = 0 : i64, scratch_operands = 1 : i64, tpu.core_type = #tpu.core_type<tc>, window_params = [{transform_indices = @transform_0, window_bounds = array<i64: 1, 4, 16, 16>}, {pipeline_mode = #tpu.pipeline_mode<synchronous>, transform_indices = @transform_1, window_bounds = array<i64: 64, 10>}, {transform_indices = @transform_2, window_bounds = array<i64: 1, 1, 10>}]} {
    %c0_i32 = arith.constant 0 : i32
    %0 = arith.cmpi eq, %arg1, %c0_i32 : i32
    %1 = arith.extui %0 : i1 to i32
    %c0_i32_0 = arith.constant 0 : i32
    %2 = arith.cmpi ne, %1, %c0_i32_0 : i32
    scf.if %2 {
      %cst_13 = arith.constant 0.000000e+00 : f32
      %19 = vector.broadcast %cst_13 : f32 to vector<1x10xf32>
      %c0_14 = arith.constant 0 : index
      %c0_15 = arith.constant 0 : index
      %20 = vector.load %arg5[%c0_14, %c0_15] : memref<1x10xf32, #tpu.memory_space<vmem>>, vector<1x10xf32>
      tpu.vector_store %arg5[%c0_14, %c0_15], %19 {strides = array<i32>} : memref<1x10xf32, #tpu.memory_space<vmem>>, vector<1x10xf32>,
    } else {
    }
    %c0 = arith.constant 0 : index
    %c0_1 = arith.constant 0 : index
    %c0_2 = arith.constant 0 : index
    %c0_3 = arith.constant 0 : index
    %3 = vector.load %arg2[%c0, %c0_1, %c0_2, %c0_3] : memref<1x4x16x16xf32, #tpu.memory_space<vmem>>, vector<1x4x16x16xf32>
    %4 = vector.shape_cast %3 : vector<1x4x16x16xf32> to vector<4x16x16xf32>
    %5 = vector.shape_cast %4 : vector<4x16x16xf32> to vector<64x16xf32>
    %cst = arith.constant dense<0.000000e+00> : vector<64xf32>
    %6 = vector.multi_reduction <add>, %5, %cst [1] : vector<64x16xf32> to vector<64xf32>
    %7 = vector.shape_cast %6 : vector<64xf32> to vector<64x1xf32>
    %c0_4 = arith.constant 0 : index
    %c0_5 = arith.constant 0 : index
    %8 = vector.load %arg5[%c0_4, %c0_5] : memref<1x10xf32, #tpu.memory_space<vmem>>, vector<1x10xf32>
    %c0_6 = arith.constant 0 : index
    %c0_7 = arith.constant 0 : index
    %9 = vector.load %arg3[%c0_6, %c0_7] : memref<64x10xf32, #tpu.memory_space<vmem>>, vector<64x10xf32>
    %10 = vector.broadcast %7 : vector<64x1xf32> to vector<64x10xf32>
    %11 = arith.mulf %10, %9 : vector<64x10xf32>
    %cst_8 = arith.constant dense<0.000000e+00> : vector<10xf32>
    %12 = vector.multi_reduction <add>, %11, %cst_8 [0] : vector<64x10xf32> to vector<10xf32>
    %13 = vector.shape_cast %12 : vector<10xf32> to vector<1x10xf32>
    %14 = arith.addf %8, %13 : vector<1x10xf32>
    %c0_9 = arith.constant 0 : index
    %c0_10 = arith.constant 0 : index
    %15 = vector.load %arg5[%c0_9, %c0_10] : memref<1x10xf32, #tpu.memory_space<vmem>>, vector<1x10xf32>
    tpu.vector_store %arg5[%c0_9, %c0_10], %14 {strides = array<i32>} : memref<1x10xf32, #tpu.memory_space<vmem>>, vector<1x10xf32>,
    %c0_i32_11 = arith.constant 0 : i32
    %16 = arith.cmpi eq, %arg1, %c0_i32_11 : i32
    %17 = arith.extui %16 : i1 to i32
    %c0_i32_12 = arith.constant 0 : i32
    %18 = arith.cmpi ne, %17, %c0_i32_12 : i32
    scf.if %18 {
      %c0_13 = arith.constant 0 : index
      %c0_14 = arith.constant 0 : index
      %19 = vector.load %arg5[%c0_13, %c0_14] : memref<1x10xf32, #tpu.memory_space<vmem>>, vector<1x10xf32>
      %cst_15 = arith.constant 3.906250e-03 : f32
      %20 = vector.broadcast %cst_15 : f32 to vector<1x10xf32>
      %21 = arith.mulf %19, %20 : vector<1x10xf32>
      %cst_16 = arith.constant 0.000000e+00 : f32
      %22 = vector.broadcast %cst_16 : f32 to vector<1x10xf32>
      %23 = arith.subf %22, %21 : vector<1x10xf32>
      %24 = math.exp %23 : vector<1x10xf32>
      %cst_17 = arith.constant 1.000000e+00 : f32
      %25 = vector.broadcast %cst_17 : f32 to vector<1x10xf32>
      %26 = arith.addf %25, %24 : vector<1x10xf32>
      %cst_18 = arith.constant 1.000000e+00 : f32
      %27 = vector.broadcast %cst_18 : f32 to vector<1x10xf32>
      %28 = arith.divf %27, %26 : vector<1x10xf32>
      %c0_19 = arith.constant 0 : index
      %c0_20 = arith.constant 0 : index
      %c0_21 = arith.constant 0 : index
      %29 = vector.load %arg4[%c0_19, %c0_20, %c0_21] : memref<1x1x10xf32, #tpu.memory_space<vmem>>, vector<1x1x10xf32>
      %30 = vector.shape_cast %29 : vector<1x1x10xf32> to vector<1x10xf32>
      %31 = vector.shape_cast %28 : vector<1x10xf32> to vector<1x1x10xf32>
      tpu.vector_store %arg4[%c0_19, %c0_20, %c0_21], %31 {strides = array<i32>} : memref<1x1x10xf32, #tpu.memory_space<vmem>>, vector<1x1x10xf32>,
    } else {
    }
    return
  }
  func.func @transform_0(%arg0: i32, %arg1: i32) -> (i32, i32, i32, i32) {
    %c0_i32 = arith.constant 0 : i32
    %c0_i32_0 = arith.constant 0 : i32
    %c0_i32_1 = arith.constant 0 : i32
    return %arg0, %c0_i32, %arg1, %c0_i32_0 : i32, i32, i32, i32
  }
  func.func @transform_1(%arg0: i32, %arg1: i32) -> (i32, i32) {
    %c0_i32 = arith.constant 0 : i32
    %c0_i32_0 = arith.constant 0 : i32
    %c0_i32_1 = arith.constant 0 : i32
    return %c0_i32, %c0_i32_0 : i32, i32
  }
  func.func @transform_2(%arg0: i32, %arg1: i32) -> (i32, i32, i32) {
    %c0_i32 = arith.constant 0 : i32
    %c0_i32_0 = arith.constant 0 : i32
    %c0_i32_1 = arith.constant 0 : i32
    return %arg0, %c0_i32, %c0_i32_0 : i32, i32, i32
  }
}

</mosaic_0001>

<llo_original>
// kernel: tpu_custom_call.1
$region0: #{tpu_custom_call.1}
  #allocation0 [shape = 'u32[]', space=smem, size = 0x4, offset = 0x4, fixed_abs, tag = 'smem constant byte address 0x4 - core index']
  #allocation1 [shape = 'u32[72,128]{1,0:T(1,128)}', space=vmem, size = 0x9000, scoped, tag = 'internal scratch']
  #allocation2 [shape = 'f32[1,10]{1,0:T(1,128)}', space=vmem, size = 0x200, scoped, tag = 'scratch operand']
  %s0 = inlined_call_operand.hbm [shape: f32[2,4,16,16], index: 0, kind: input, shape index: {}]
  %s1 = inlined_call_operand.vmem [shape: f32[64,10], index: 1, kind: input, shape index: {}]
  %s2 = inlined_call_operand.hbm [shape: f32[2,1,10], index: 2, kind: output, shape index: {}]
  %s3 = sld [smem:[#allocation0]]
  $region53: #{tpu_custom_call.1} parent=0
    _
  %s5 = ssub.s32 1, %s3
  %s6 = scalar_select 0, %s5, %s3
  $region1: #{tpu_custom_call.1} parent=0
    #allocation3 [shape = 'u8[65536]{0}', space=vmem, size = 0x10000, scoped, tag = 'input window, operand 0']
    #allocation4 [shape = 's32[2]{0}', space=sflag, size = 0x8, scoped, tag = 'scoped memory for tpu_custom_call.1']
    #allocation5 [shape = 's32[2]{0}', space=sflag, size = 0x8, scoped, tag = 'scoped memory for tpu_custom_call.1']
    #allocation6 [shape = 'u8[1024]{0}', space=vmem, size = 0x400, scoped, tag = 'output window, operand 0']
    %7 = vsyncpa [#allocation4], 0
    %s8 = scalar_lea.sflag [#allocation4], 1
    %9 = vsyncpa %s8, 0
    %10 = vsyncpa [#allocation5], 0
    %s11 = scalar_lea.sflag [#allocation5], 1
    %12 = vsyncpa %s11, 0
    loop: start=0, step=1, limit=4
    $region2: #{tpu_custom_call.1} parent=1 // loop_pre_header
      _
    $region3: #{tpu_custom_call.1} parent=1 // loop_header
      %s14 = sphi 0, %s18
      %p15 = scmp.ge.s32.totalorder %s14, 4
      %s21 = sphi 0, %s33
      %s22 = sphi 0, %s29
      %s23 = sphi 0, %s21
      %s24 = sphi 0, %s22
      %s25 = sphi 0, %s23
      %s26 = sphi 0, %s24
      %s38 = sphi 0, %s40
      %s41 = sphi 0, %s38
      %s42 = sphi 0, %s41
      %s58 = sphi 0, %s42
      %s62 = sphi 0, %s62
      %s64 = sphi 0, %s62
      %s65 = sphi 0, %s64
      %s79 = sphi 0, %s65
      %s85 = sphi 0, %s87
      %s88 = sphi 0, %s85
      %s89 = sphi 0, %s88
      %s105 = sphi 0, %s89
    $region4: #{tpu_custom_call.1} parent=1 // loop_header_branch
      %17 = sbr.rel (%p15) target = $region8
    $region5: #{tpu_custom_call.1} parent=1 // loop_body
      %s19 = ssub.s32 %s14, 1
      %s20 = ssub.s32 %s14, 2
      %s27 = sadd.s32 1, %s22
      %p28 = scmp.ge.s32.totalorder %s27, 1
      %s29 = scalar_select %p28, 0, %s27
      %s30 = sadd.s32 1, %s21
      %s31 = scalar_select %p28, %s30, %s21
      %p32 = scmp.ge.s32.totalorder %s31, 2
      %s33 = scalar_select %p32, 0, %s31
      %s34 = ssub.s32 %s21, %s33
      %s35 = ssub.s32 %s22, %s29
      %s36 = sor.u32 %s34, %s35
      %p37 = scmp.eq.s32.totalorder %s36, 0
      %s39 = sadd.s32 %s38, 1
      %s40 = scalar_select %p37, %s38, %s39
      %p43 = pneg %p37
      %p44 = scmp.eq.s32.totalorder %s14, 1
      %p45 = por %p43, %p44
      %p46 = scmp.ne.s32.totalorder %s38, %s41
      %p47 = scmp.eq.s32.totalorder %s14, 0
      %p48 = por %p46, %p47
      %p49 = scmp.ne.s32.totalorder %s38, %s41
      %p50 = scmp.eq.s32.totalorder %s19, 1
      %p51 = por %p49, %p50
      %p52 = scmp.ne.s32.totalorder %s41, %s42
      %p53 = scmp.eq.s32.totalorder %s19, 0
      %p54 = por %p52, %p53
      %p55 = scmp.ne.s32.totalorder %s41, %s42
      %p56 = scmp.eq.s32.totalorder %s20, 1
      %p57 = por %p55, %p56
      %p59 = scmp.ne.s32.totalorder %s42, %s58
      %p60 = scmp.eq.s32.totalorder %s20, 0
      %p61 = por %p59, %p60
      %s63 = sadd.s32 %s62, 1
      %p66 = scmp.eq.s32.totalorder %s14, 1
      %p67 = scmp.ne.s32.totalorder %s62, %s64
      %p68 = scmp.eq.s32.totalorder %s14, 0
      %p69 = por %p67, %p68
      %p70 = scmp.ne.s32.totalorder %s62, %s64
      %p71 = scmp.eq.s32.totalorder %s19, 1
      %p72 = por %p70, %p71
      %p73 = scmp.ne.s32.totalorder %s64, %s65
      %p74 = scmp.eq.s32.totalorder %s19, 0
      %p75 = por %p73, %p74
      %p76 = scmp.ne.s32.totalorder %s64, %s65
      %p77 = scmp.eq.s32.totalorder %s20, 1
      %p78 = por %p76, %p77
      %p80 = scmp.ne.s32.totalorder %s65, %s79
      %p81 = scmp.eq.s32.totalorder %s20, 0
      %p82 = por %p80, %p81
      %s83 = ssub.s32 %s21, %s33
      %p84 = scmp.eq.s32.totalorder %s83, 0
      %s86 = sadd.s32 %s85, 1
      %s87 = scalar_select %p84, %s85, %s86
      %p90 = pneg %p84
      %p91 = scmp.eq.s32.totalorder %s14, 1
      %p92 = por %p90, %p91
      %p93 = scmp.ne.s32.totalorder %s85, %s88
      %p94 = scmp.eq.s32.totalorder %s14, 0
      %p95 = por %p93, %p94
      %p96 = scmp.ne.s32.totalorder %s85, %s88
      %p97 = scmp.eq.s32.totalorder %s19, 1
      %p98 = por %p96, %p97
      %p99 = scmp.ne.s32.totalorder %s88, %s89
      %p100 = scmp.eq.s32.totalorder %s19, 0
      %p101 = por %p99, %p100
      %p102 = scmp.ne.s32.totalorder %s88, %s89
      %p103 = scmp.eq.s32.totalorder %s20, 1
      %p104 = por %p102, %p103
      %p106 = scmp.ne.s32.totalorder %s89, %s105
      %p107 = scmp.eq.s32.totalorder %s20, 0
      %p108 = por %p106, %p107
      %p109 = scmp.le.s32.totalorder 1, %s14
      %p110 = scmp.lt.s32.totalorder %s14, 3
      %p111 = pnand %p109, %p110
      %p112 = pneg %p111
      // Predicated region
      $region9: #{tpu_custom_call.1} parent=5 // pred_check
        _
      $region10: #{tpu_custom_call.1} parent=5 // pred_check_branch
        %114 = sbr.rel (%p111) target = $region12
      $region11: #{tpu_custom_call.1} parent=5 // pred_region
        %s115 = ssub.s32 %s14, 1
        // Predicated region
        $region13: #{tpu_custom_call.1} parent=11 // pred_check
          %p116 = pneg %p75
        $region14: #{tpu_custom_call.1} parent=11 // pred_check_branch
          %118 = sbr.rel (%p116) target = $region16
        $region15: #{tpu_custom_call.1} parent=11 // pred_region
          _
        $region16: #{tpu_custom_call.1} parent=11 // pred_fallthru
          _
      $region12: #{tpu_custom_call.1} parent=5 // pred_fallthru
        _
      %p119 = scmp.lt.s32.totalorder %s14, 2
      // Predicated region
      $region17: #{tpu_custom_call.1} parent=5 // pred_check
        %p120 = pneg %p119
      $region18: #{tpu_custom_call.1} parent=5 // pred_check_branch
        %122 = sbr.rel (%p120) target = $region20
      $region19: #{tpu_custom_call.1} parent=5 // pred_region
        // Predicated region
        $region21: #{tpu_custom_call.1} parent=19 // pred_check
          %p123 = pneg %p48
        $region22: #{tpu_custom_call.1} parent=19 // pred_check_branch
          %125 = sbr.rel (%p123) target = $region24
        $region23: #{tpu_custom_call.1} parent=19 // pred_region
          %s126 = sand.u32 %s38, 1
          %s127 = scalar_lea.sflag [#allocation4], %s126
          %s128 = sand.u32 %s38, 1
          %s129 = smul.addr %s128, 64
          %s130 = scalar_lea.vmem [#allocation3], %s129
          %s131 = smul.u32 2, %s22
          %133 = vsyncadd %s127, 0
          %s134 = smul.addr %s21, 8
          %s135 = sadd.s32 %s131, %s134
          %s136 = smul.addr %s135, 8
          %s137 = scalar_lea.hbm %s0, %s136
          %s138 = sshll.u32 %s137, 4
          %s139 = int_to_ptr.hbm [resolvable:$true] %s138
          %s140 = sshll.u32 %s130, 4
          %s141 = int_to_ptr.vmem [resolvable:$true] %s140
          %146 = dma.hbm_to_vmem [thread:$0]  %s139, 1024, %s141, %s127, 128, 128, 8
        $region24: #{tpu_custom_call.1} parent=19 // pred_fallthru
          _
      $region20: #{tpu_custom_call.1} parent=5 // pred_fallthru
        _
      %p147 = scmp.le.s32.totalorder 1, %s14
      %p148 = scmp.lt.s32.totalorder %s14, 3
      %p149 = pnand %p147, %p148
      %p150 = pneg %p149
      // Predicated region
      $region25: #{tpu_custom_call.1} parent=5 // pred_check
        _
      $region26: #{tpu_custom_call.1} parent=5 // pred_check_branch
        %152 = sbr.rel (%p149) target = $region28
      $region27: #{tpu_custom_call.1} parent=5 // pred_region
        %s153 = ssub.s32 %s14, 1
        %s154 = sand.u32 %s41, 1
        %s155 = scalar_lea.sflag [#allocation4], %s154
        %s156 = sand.u32 %s41, 1
        %s157 = smul.addr %s156, 64
        %s158 = scalar_lea.vmem [#allocation3], %s157
        // Predicated region
        $region29: #{tpu_custom_call.1} parent=27 // pred_check
          %p159 = pneg %p54
        $region30: #{tpu_custom_call.1} parent=27 // pred_check_branch
          %161 = sbr.rel (%p159) target = $region32
        $region31: #{tpu_custom_call.1} parent=27 // pred_region
          %163 = dma.done %s155, 1024
        $region32: #{tpu_custom_call.1} parent=27 // pred_fallthru
          _
        %s164 = sand.u32 %s41, 1
        %s165 = scalar_lea.sflag [#allocation4], %s164
        %s166 = sand.u32 %s41, 1
        %s167 = smul.addr %s166, 64
        %s168 = scalar_lea.vmem [#allocation3], %s167
        %p169 = pneg %p54
        %p170 = pneg %p51
        %p171 = pneg %p75
        %p172 = pneg %p72
        %p173 = pneg %p101
        %p174 = pneg %p98
        %s175 = sand.u32 %s88, 1
        %s176 = scalar_lea.sflag [#allocation5], %s175
        %s177 = sand.u32 %s88, 1
        %s178 = scalar_lea.vmem [#allocation6], %s177
        %s179 = smul.u32 2, %s24
        %p180 = scmp.eq.s32.totalorder %s24, 0
        // Predicated region
        $region33: #{tpu_custom_call.1} parent=27 // pred_check
          %p181 = pneg %p180
        $region34: #{tpu_custom_call.1} parent=27 // pred_check_branch
          %183 = sbr.rel (%p181) target = $region36
        $region35: #{tpu_custom_call.1} parent=27 // pred_region
          %vm184 = vcmask 73728
          %185 = vst.msk [vmem:[#allocation2] sm:$0x1] %vm184, 0.0
        $region36: #{tpu_custom_call.1} parent=27 // pred_fallthru
          _
        %v186 = vld [vmem:[%s158] sm:$0xff]
        %v187 = vld [vmem:[%s158 + $0x8] sm:$0xff]
        %v188 = vld [vmem:[%s158 + $0x10] sm:$0xff]
        %v189 = vld [vmem:[%s158 + $0x18] sm:$0xff]
        %v190 = vld [vmem:[%s158 + $0x20] sm:$0xff]
        %v191 = vld [vmem:[%s158 + $0x28] sm:$0xff]
        %v192 = vld [vmem:[%s158 + $0x30] sm:$0xff]
        %v193 = vld [vmem:[%s158 + $0x38] sm:$0xff]
        %vm194 = vcmask 130048
        %v195 = vsel %vm194, %v186, 0.0
        %196 = vadd.xlane.f32.xlu0 %v195
        %v197 = vpop.xlane.xlu0 %196
        %v198 = vsel %vm194, %v187, 0.0
        %199 = vadd.xlane.f32.xlu0 %v198
        %v200 = vpop.xlane.xlu0 %199
        %v201 = vsel %vm194, %v188, 0.0
        %202 = vadd.xlane.f32.xlu0 %v201
        %v203 = vpop.xlane.xlu0 %202
        %v204 = vsel %vm194, %v189, 0.0
        %205 = vadd.xlane.f32.xlu0 %v204
        %v206 = vpop.xlane.xlu0 %205
        %v207 = vsel %vm194, %v190, 0.0
        %208 = vadd.xlane.f32.xlu0 %v207
        %v209 = vpop.xlane.xlu0 %208
        %v210 = vsel %vm194, %v191, 0.0
        %211 = vadd.xlane.f32.xlu0 %v210
        %v212 = vpop.xlane.xlu0 %211
        %v213 = vsel %vm194, %v192, 0.0
        %214 = vadd.xlane.f32.xlu0 %v213
        %v215 = vpop.xlane.xlu0 %214
        %v216 = vsel %vm194, %v193, 0.0
        %217 = vadd.xlane.f32.xlu0 %v216
        %v218 = vpop.xlane.xlu0 %217
        %v219 = vld [vmem:[#allocation2] sm:$0x1]
        %v220 = vld [vmem:[%s1] sm:$0xff]
        %v221 = vld [vmem:[%s1 + $0x8] sm:$0xff]
        %v222 = vld [vmem:[%s1 + $0x10] sm:$0xff]
        %v223 = vld [vmem:[%s1 + $0x18] sm:$0xff]
        %v224 = vld [vmem:[%s1 + $0x20] sm:$0xff]
        %v225 = vld [vmem:[%s1 + $0x28] sm:$0xff]
        %v226 = vld [vmem:[%s1 + $0x30] sm:$0xff]
        %v227 = vld [vmem:[%s1 + $0x38] sm:$0xff]
        %v228 = vmul.f32 %v197, %v220
        %v229 = vmul.f32 %v200, %v221
        %v230 = vmul.f32 %v203, %v222
        %v231 = vmul.f32 %v206, %v223
        %v232 = vmul.f32 %v209, %v224
        %v233 = vmul.f32 %v212, %v225
        %v234 = vmul.f32 %v215, %v226
        %v235 = vmul.f32 %v218, %v227
        %vm236 = vcmask 80896
        %v237 = vsel %vm236, %v228, 0.0
        %v238 = vsel %vm236, %v229, 0.0
        %v239 = vadd.f32 %v237, %v238
        %v240 = vsel %vm236, %v230, 0.0
        %v241 = vadd.f32 %v239, %v240
        %v242 = vsel %vm236, %v231, 0.0
        %v243 = vadd.f32 %v241, %v242
        %v244 = vsel %vm236, %v232, 0.0
        %v245 = vadd.f32 %v243, %v244
        %v246 = vsel %vm236, %v233, 0.0
        %v247 = vadd.f32 %v245, %v246
        %v248 = vsel %vm236, %v234, 0.0
        %v249 = vadd.f32 %v247, %v248
        %v250 = vsel %vm236, %v235, 0.0
        %v251 = vadd.f32 %v249, %v250
        %v252 = vrot.slane %v251, 4
        %v253 = vadd.f32 %v251, %v252
        %v254 = vrot.slane %v253, 2
        %v255 = vadd.f32 %v253, %v254
        %v256 = vrot.slane %v255, 1
        %v257 = vadd.f32 %v255, %v256
        %v258 = vadd.f32 %v219, %v257
        %vm259 = vcmask 73728
        %260 = vst.msk [vmem:[#allocation2] sm:$0x1] %vm259, %v258
        // Predicated region
        $region37: #{tpu_custom_call.1} parent=27 // pred_check
          %p261 = pneg %p180
        $region38: #{tpu_custom_call.1} parent=27 // pred_check_branch
          %263 = sbr.rel (%p261) target = $region40
        $region39: #{tpu_custom_call.1} parent=27 // pred_region
          %v264 = vld [vmem:[#allocation2] sm:$0x1]
          %v265 = vmul.f32 %v264, 0.00390625
          %v266 = vsub.f32 0.0, %v265
          %v267 = vmul.f32 %v266, 1.442695
          %v268 = vpow.pop %v267
          %v269 = vadd.f32 %v268, 1.0
          %v270 = vrcp.pop %v269
          %v271 = vmul.f32 %v269, %v270
          %v272 = vsub.f32 1.0, %v271
          %v273 = vmul.f32 %v270, %v272
          %v274 = vadd.f32 %v270, %v273
          %vm275 = vweird.f32 %v269
          %vm276 = vweird.f32 %v270
          %vm277 = vmor %vm275, %vm276
          %v278 = vsel %vm277, %v270, %v274
          %v279 = vand.u32 2147483647, %v269
          %vm280 = vcmp.eq.f32.partialorder %v279, 8.507059e+37
          %v281 = vand.u32 %v269, 2147483648
          %v282 = vor.u32 1.1754944e-38, %v281
          %v283 = vsel %vm280, %v282, %v278
          %v284 = vmul.f32 1.0, %v283
          %285 = vst.msk [vmem:[%s178] sm:$0x1] %vm259, %v284
        $region40: #{tpu_custom_call.1} parent=27 // pred_fallthru
          _
        %s286 = sand.u32 %s88, 1
        %s287 = scalar_lea.sflag [#allocation5], %s286
        %s288 = sand.u32 %s88, 1
        %s289 = scalar_lea.vmem [#allocation6], %s288
        // Predicated region
        $region41: #{tpu_custom_call.1} parent=27 // pred_check
          %p290 = pneg %p98
        $region42: #{tpu_custom_call.1} parent=27 // pred_check_branch
          %292 = sbr.rel (%p290) target = $region44
        $region43: #{tpu_custom_call.1} parent=27 // pred_region
          %294 = vsyncadd %s287, 0
          %s295 = scalar_lea.hbm %s2, %s23
          %s297 = sshll.u32 %s289, 4
          %s298 = int_to_ptr.vmem [resolvable:$true] %s297
          %s299 = sshll.u32 %s295, 4
          %s300 = int_to_ptr.hbm [resolvable:$true] %s299
          %302 = dma.vmem_to_hbm [thread:$0]  %s298, 16, %s300, %s287
        $region44: #{tpu_custom_call.1} parent=27 // pred_fallthru
          _
      $region28: #{tpu_custom_call.1} parent=5 // pred_fallthru
        _
      %p303 = scmp.le.s32.totalorder 2, %s14
      // Predicated region
      $region45: #{tpu_custom_call.1} parent=5 // pred_check
        %p304 = pneg %p303
      $region46: #{tpu_custom_call.1} parent=5 // pred_check_branch
        %306 = sbr.rel (%p304) target = $region48
      $region47: #{tpu_custom_call.1} parent=5 // pred_region
        %s307 = ssub.s32 %s14, 2
        // Predicated region
        $region49: #{tpu_custom_call.1} parent=47 // pred_check
          %p308 = pneg %p104
        $region50: #{tpu_custom_call.1} parent=47 // pred_check_branch
          %310 = sbr.rel (%p308) target = $region52
        $region51: #{tpu_custom_call.1} parent=47 // pred_region
          %s311 = sand.u32 %s89, 1
          %s312 = scalar_lea.sflag [#allocation5], %s311
          %s313 = sand.u32 %s89, 1
          %s314 = scalar_lea.vmem [#allocation6], %s313
          %316 = dma.done %s312, 16
        $region52: #{tpu_custom_call.1} parent=47 // pred_fallthru
          _
      $region48: #{tpu_custom_call.1} parent=5 // pred_fallthru
        _
    $region6: #{tpu_custom_call.1} parent=1 // loop_footer
      %s18 = sadd.s32 1, %s14
    $region7: #{tpu_custom_call.1} parent=1 // loop_footer_branch
      %13 = sbr.rel target = $region3
    $region8: #{tpu_custom_call.1} parent=1 // loop_exit
      _
    %317 = vsyncpa [#allocation4], 1
    %s318 = scalar_lea.sflag [#allocation4], 1
    %319 = vsyncpa %s318, 1
    %320 = vsyncpa [#allocation5], 1
    %s321 = scalar_lea.sflag [#allocation5], 1
    %322 = vsyncpa %s321, 1

</llo_original>
